<compile_context>
chip_gen: v5e
topology: v5e:2x2
jax: 0.10.0
libtpu: 0.0.40
codegen_flags: <defaults>
</compile_context>

<pallas_src>
import jax
import jax.numpy as jnp
from jax import lax
from jax.experimental import pallas as pl
from jax.experimental.pallas import tpu as pltpu

_LANE = 128
_MiB = 1024 * 1024


def _round_up(x, m):
    return ((x + m - 1) // m) * m


def _pick_tile(dim, cap):
    """Largest multiple of 128 that divides `dim` (a multiple of 128), <= cap."""
    best = _LANE
    t = _LANE
    stop = min(dim, max(cap, _LANE))
    while t <= stop:
        if dim % t == 0:
            best = t
        t += _LANE
    return best


def _vmem_plan():
    """(pipeline-buffer budget, vmem_limit_bytes) from physical VMEM size."""
    try:
        info = pltpu.get_tpu_info()
        phys = int(getattr(info, "vmem_capacity_bytes", 64 * _MiB))
    except Exception:
        phys = 64 * _MiB  # conservative (v7x-sized)
    buf_budget = min(phys // 2, 48 * _MiB)          # v7x: 32 MiB, v5e/v6e: 48 MiB
    vmem_limit = min(buf_budget + 16 * _MiB, (phys * 3) // 4)
    return buf_budget, vmem_limit


def _make_kernel(tk, x_resident, acc_in_output):
    """One (n, k) grid step of y = x @ W.T + b.

    x_ref : (B, K)  if x_resident else (B, tk)
    w_ref : (tn, tk)   native PyTorch (out, in) layout (K lane-dense)
    b_ref : (1, tn)
    o_ref : (B, tn)    K-resident output tile (block index (0, n))
    """

    def _partial(x_ref, w_ref, k):
        if x_resident:
            off = pl.multiple_of(k * tk, _LANE)
            x_blk = x_ref[:, pl.ds(off, tk)]
        else:
            x_blk = x_ref[...]
        # Contract x(B, tk) with w(tn, tk) along K of both -> (B, tn).
        return lax.dot_general(
            x_blk, w_ref[...],
            dimension_numbers=(((1,), (1,)), ((), ())),
            preferred_element_type=jnp.float32)

    if acc_in_output:
        # f32 output: accumulate straight into the (K-resident) output block.
        def kernel(x_ref, w_ref, b_ref, o_ref):
            k = pl.program_id(1)

            @pl.when(k == 0)
            def _():
                o_ref[...] = jnp.broadcast_to(
                    b_ref[...], o_ref.shape).astype(o_ref.dtype)

            o_ref[...] += _partial(x_ref, w_ref, k)
    else:
        # Non-f32 output: keep an f32 scratch accumulator + cast epilogue.
        def kernel(x_ref, w_ref, b_ref, o_ref, acc_ref):
            k = pl.program_id(1)

            @pl.when(k == 0)
            def _():
                acc_ref[...] = jnp.zeros_like(acc_ref)

            acc_ref[...] += _partial(x_ref, w_ref, k)

            @pl.when(k == pl.num_programs(1) - 1)
            def _():
                o_ref[...] = (acc_ref[...] + b_ref[...]).astype(o_ref.dtype)

    return kernel


def linear_reducing_layer(vision, weight, bias, *, tk=None, tn=None):
    """Pallas implementation of LinearReducingLayer.forward.

    vision: (B, C, H, W)   (any leading shape; flattened per batch row)
    weight: (out, in)      native PyTorch nn.Linear layout (NOT transposed)
    bias:   (out,)
    returns (B, out), dtype of `vision`.
    """
    B = vision.shape[0]
    x = vision.reshape(B, -1)                   # same as torch .view on NCHW
    K = x.shape[1]
    N, K_w = weight.shape
    assert K_w == K, (K_w, K)

    out_dtype = x.dtype
    x_isz = jnp.dtype(x.dtype).itemsize
    w_isz = jnp.dtype(weight.dtype).itemsize

    # ---- Pad K to a lane multiple (zeros don't change x @ W.T). ----
    K_pad = K if K % _LANE == 0 else _round_up(K, _LANE)
    if K_pad != K:
        x = jnp.pad(x, ((0, 0), (0, K_pad - K)))
        weight = jnp.pad(weight, ((0, 0), (0, K_pad - K)))

    buf_budget, vmem_limit = _vmem_plan()

    # ---- N tile: lane-dense, big, but keep >=2 parallel programs (v7x). ----
    if tn is None:
        if N < _LANE or N % _LANE != 0:
            tn = N                              # full-dim block is always legal
        else:
            tn_cap = 1024
            if N >= 256:
                tn_cap = min(tn_cap, N // 2)    # second TensorCore gets work
            tn = _pick_tile(N, tn_cap)

    # ---- x residency: keep the whole activation row-block in VMEM if cheap. ----
    x_resident_bytes = 2 * B * K_pad * x_isz    # count double-buffering conservatively
    x_resident = x_resident_bytes <= buf_budget // 2

    # ---- K tile: largest lane-multiple divisor of K_pad that fits the budget. ----
    if tk is None:
        fixed = (x_resident_bytes if x_resident else 0)        # resident x
        fixed += 2 * B * max(tn, _LANE) * 4                    # output buffers
        fixed += 2 * 8 * max(tn, _LANE) * 4                    # bias (padded)
        avail = max(buf_budget - fixed, 2 * tn * _LANE * w_isz)
        per_col = 2 * tn * w_isz + (0 if x_resident else 2 * B * x_isz)
        tk_cap_vmem = max(_LANE, (avail // per_col) // _LANE * _LANE)
        tk_cap = min(2048, tk_cap_vmem)
        tk = _pick_tile(K_pad, tk_cap)
    assert K_pad % tk == 0 and N % tn == 0

    b2 = bias.reshape(1, N)

    # Grid: N tiles (parallel -> megacore), K tiles last (reduction, "arbitrary").
    grid = (N // tn, K_pad // tk)

    acc_in_output = (out_dtype == jnp.float32)

    if x_resident:
        x_spec = pl.BlockSpec((B, K_pad), lambda n, k: (0, 0))   # DMA'd once
    else:
        x_spec = pl.BlockSpec((B, tk), lambda n, k: (0, k))      # streamed along K

    in_specs = [
        x_spec,
        # weights: the HBM-bandwidth-bound stream (default 2-deep pipelining;
        # one bigger buffer beats one extra buffer for a pure DMA-bound stream)
        pl.BlockSpec((tn, tk), lambda n, k: (n, k)),
        # bias: tiny, only needed at the first/last K step
        pl.BlockSpec((1, tn), lambda n, k: (0, n)),
    ]
    out_spec = pl.BlockSpec((B, tn), lambda n, k: (0, n))
    scratch = [] if acc_in_output else [pltpu.VMEM((B, tn), jnp.float32)]

    cost = pl.CostEstimate(
        flops=2 * B * K_pad * N,
        transcendentals=0,
        bytes_accessed=(B * K_pad * x_isz + K_pad * N * w_isz
                        + N * 4 + B * N * jnp.dtype(out_dtype).itemsize))

    out = pl.pallas_call(
        _make_kernel(tk, x_resident, acc_in_output),
        out_shape=jax.ShapeDtypeStruct((B, N), out_dtype),
        grid_spec=pltpu.PrefetchScalarGridSpec(
            num_scalar_prefetch=0,
            grid=grid,
            in_specs=in_specs,
            out_specs=out_spec,
            scratch_shapes=scratch,
        ),
        compiler_params=pltpu.CompilerParams(
            dimension_semantics=("parallel", "arbitrary"),
            vmem_limit_bytes=int(vmem_limit)),
        cost_estimate=cost,
    )(x, weight, b2)
    return out


if __name__ == "__main__":
    # Small shapes consistent with the module: vision (B, C, H, W) -> flatten -> Linear.
    B, C, H, W = 2, 4, 16, 16
    vision_size_flatten = C * H * W            # 1024
    output_size = 32

    key = jax.random.PRNGKey(0)
    k_x, k_w, k_b = jax.random.split(key, 3)

    vision = jax.random.normal(k_x, (B, C, H, W), dtype=jnp.float32)

    # PyTorch-style uniform(-1/sqrt(in), 1/sqrt(in)) init, deterministic.
    bound = 1.0 / (vision_size_flatten ** 0.5)
    weight = jax.random.uniform(k_w, (output_size, vision_size_flatten),
                                dtype=jnp.float32, minval=-bound, maxval=bound)
    bias = jax.random.uniform(k_b, (output_size,),
                              dtype=jnp.float32, minval=-bound, maxval=bound)

    y = linear_reducing_layer(vision, weight, bias)
    y = jax.block_until_ready(y)

    # Reference check against plain-JAX math (same semantics as the PyTorch module).
    y_ref = vision.reshape(B, -1) @ weight.T + bias
    assert y.shape == (B, output_size)
    assert jnp.allclose(y, y_ref, atol=1e-5, rtol=1e-5)

    print("KERNEL_OK")
</pallas_src>

<mosaic_0001>
module attributes {stable_mosaic.version = 11 : i64} {
  func.func @kernel(%arg0: i32, %arg1: i32, %arg2: memref<2x1024xf32, #tpu.memory_space<vmem>>, %arg3: memref<32x1024xf32, #tpu.memory_space<vmem>>, %arg4: memref<1x32xf32, #tpu.memory_space<vmem>>, %arg5: memref<2x32xf32, #tpu.memory_space<vmem>>) attributes {dimension_semantics = [#tpu.dimension_semantics<parallel>, #tpu.dimension_semantics<arbitrary>], iteration_bounds = array<i64: 1, 1>, scalar_prefetch = 0 : i64, scratch_operands = 0 : i64, tpu.core_type = #tpu.core_type<tc>, window_params = [{pipeline_mode = #tpu.pipeline_mode<synchronous>, transform_indices = @transform_0, window_bounds = array<i64: 2, 1024>}, {transform_indices = @transform_1, window_bounds = array<i64: 32, 1024>}, {transform_indices = @transform_2, window_bounds = array<i64: 1, 32>}, {transform_indices = @transform_3, window_bounds = array<i64: 2, 32>}]} {
    %c0_i32 = arith.constant 0 : i32
    %0 = arith.cmpi eq, %arg1, %c0_i32 : i32
    %1 = arith.extui %0 : i1 to i32
    %c0_i32_0 = arith.constant 0 : i32
    %2 = arith.cmpi ne, %1, %c0_i32_0 : i32
    scf.if %2 {
      %c0_7 = arith.constant 0 : index
      %c0_8 = arith.constant 0 : index
      %12 = vector.load %arg4[%c0_7, %c0_8] : memref<1x32xf32, #tpu.memory_space<vmem>>, vector<1x32xf32>
      %13 = vector.shape_cast %12 : vector<1x32xf32> to vector<1x32xf32>
      %14 = vector.broadcast %13 : vector<1x32xf32> to vector<2x32xf32>
      %c0_9 = arith.constant 0 : index
      %c0_10 = arith.constant 0 : index
      %15 = vector.load %arg5[%c0_9, %c0_10] : memref<2x32xf32, #tpu.memory_space<vmem>>, vector<2x32xf32>
      tpu.vector_store %arg5[%c0_9, %c0_10], %14 {strides = array<i32>} : memref<2x32xf32, #tpu.memory_space<vmem>>, vector<2x32xf32>,
    } else {
    }
    %c0 = arith.constant 0 : index
    %c0_1 = arith.constant 0 : index
    %3 = vector.load %arg5[%c0, %c0_1] : memref<2x32xf32, #tpu.memory_space<vmem>>, vector<2x32xf32>
    %c1024_i32 = arith.constant 1024 : i32
    %4 = arith.muli %arg1, %c1024_i32 : i32
    %5 = tpu.assume_multiple %4, 128 : i32
    %c0_2 = arith.constant 0 : index
    %6 = arith.index_cast %5 : i32 to index
    %7 = vector.load %arg2[%c0_2, %6] : memref<2x1024xf32, #tpu.memory_space<vmem>>, vector<2x1024xf32>
    %c0_3 = arith.constant 0 : index
    %c0_4 = arith.constant 0 : index
    %8 = vector.load %arg3[%c0_3, %c0_4] : memref<32x1024xf32, #tpu.memory_space<vmem>>, vector<32x1024xf32>
    %cst = arith.constant dense<0.000000e+00> : vector<2x32xf32>
    %9 = tpu.matmul %7, %8, %cst {dimension_numbers = #tpu.dot_dimension_numbers<[1], [1], [0], [0], [0, 0, 1, 0], [], []>} : vector<2x1024xf32>, vector<32x1024xf32>, vector<2x32xf32> -> vector<2x32xf32>
    %10 = arith.addf %3, %9 : vector<2x32xf32>
    %c0_5 = arith.constant 0 : index
    %c0_6 = arith.constant 0 : index
    %11 = vector.load %arg5[%c0_5, %c0_6] : memref<2x32xf32, #tpu.memory_space<vmem>>, vector<2x32xf32>
    tpu.vector_store %arg5[%c0_5, %c0_6], %10 {strides = array<i32>} : memref<2x32xf32, #tpu.memory_space<vmem>>, vector<2x32xf32>,
    return
  }
  func.func @transform_0(%arg0: i32, %arg1: i32) -> (i32, i32) {
    %c0_i32 = arith.constant 0 : i32
    %c0_i32_0 = arith.constant 0 : i32
    %c0_i32_1 = arith.constant 0 : i32
    return %c0_i32, %c0_i32_0 : i32, i32
  }
  func.func @transform_1(%arg0: i32, %arg1: i32) -> (i32, i32) {
    %c0_i32 = arith.constant 0 : i32
    return %arg0, %arg1 : i32, i32
  }
  func.func @transform_2(%arg0: i32, %arg1: i32) -> (i32, i32) {
    %c0_i32 = arith.constant 0 : i32
    %c0_i32_0 = arith.constant 0 : i32
    return %c0_i32, %arg0 : i32, i32
  }
  func.func @transform_3(%arg0: i32, %arg1: i32) -> (i32, i32) {
    %c0_i32 = arith.constant 0 : i32
    %c0_i32_0 = arith.constant 0 : i32
    return %c0_i32, %arg0 : i32, i32
  }
}

</mosaic_0001>

<llo_original>
// kernel: tpu_custom_call.1
$region0: #{tpu_custom_call.1}
  #allocation0 [shape = 'u32[]', space=smem, size = 0x4, offset = 0x4, fixed_abs, tag = 'smem constant byte address 0x4 - core index']
  #allocation1 [shape = 'u32[72,128]{1,0:T(1,128)}', space=vmem, size = 0x9000, scoped, tag = 'internal scratch']
  %s0 = inlined_call_operand.hbm [shape: f32[2,1024], index: 0, kind: input, shape index: {}]
  %s1 = inlined_call_operand.hbm [shape: f32[32,1024], index: 1, kind: input, shape index: {}]
  %s2 = inlined_call_operand.vmem [shape: f32[1,32], index: 2, kind: input, shape index: {}]
  %s3 = inlined_call_operand.hbm [shape: f32[2,32], index: 3, kind: output, shape index: {}]
  %s4 = sld [smem:[#allocation0]]
  $region34: #{tpu_custom_call.1} parent=0
    _
  %s6 = ssub.s32 1, %s4
  %s7 = scalar_select 0, %s6, %s4
  $region1: #{tpu_custom_call.1} parent=0
    #allocation2 [shape = 'u8[8192]{0}', space=vmem, size = 0x2000, scoped, tag = 'input window, operand 0, single buffered']
    #allocation3 [shape = 's32[1]{0}', space=sflag, size = 0x4, scoped, tag = 'scoped memory for tpu_custom_call.1']
    #allocation4 [shape = 's32[1]{0}', space=sflag, size = 0x4, scoped, tag = 'scoped memory for tpu_custom_call.1']
    #allocation5 [shape = 'u8[131072]{0}', space=vmem, size = 0x20000, scoped, tag = 'input window, operand 1, single buffered']
    #allocation6 [shape = 's32[1]{0}', space=sflag, size = 0x4, scoped, tag = 'scoped memory for tpu_custom_call.1']
    #allocation7 [shape = 'u8[1024]{0}', space=vmem, size = 0x400, scoped, tag = 'output window, operand 0, single buffered']
    %8 = vsyncpa [#allocation3], 0
    %9 = vsyncpa [#allocation6], 0
    %10 = vsyncpa [#allocation4], 0
    // Predicated region
    $region2: #{tpu_custom_call.1} parent=1 // pred_check
      _
    $region3: #{tpu_custom_call.1} parent=1 // pred_check_branch
      %12 = sbr.rel (0) target = $region5
    $region4: #{tpu_custom_call.1} parent=1 // pred_region
      %14 = vsyncadd [#allocation3], 0
      %s16 = sshll.u32 %s0, 4
      %s17 = int_to_ptr.hbm [resolvable:$true] %s16
      %s18 = sshll.u32 [#allocation2], 4
      %s19 = int_to_ptr.vmem [resolvable:$true] %s18
      %21 = dma.hbm_to_vmem [thread:$0]  %s17, 256, %s19, [#allocation3]
    $region5: #{tpu_custom_call.1} parent=1 // pred_fallthru
      _
    // Predicated region
    $region6: #{tpu_custom_call.1} parent=1 // pred_check
      _
    $region7: #{tpu_custom_call.1} parent=1 // pred_check_branch
      %23 = sbr.rel (0) target = $region9
    $region8: #{tpu_custom_call.1} parent=1 // pred_region
      %25 = vsyncadd [#allocation6], 0
      %s26 = sshll.u32 %s1, 4
      %s27 = int_to_ptr.hbm [resolvable:$true] %s26
      %s28 = sshll.u32 [#allocation5], 4
      %s29 = int_to_ptr.vmem [resolvable:$true] %s28
      %34 = dma.hbm_to_vmem [thread:$0]  %s27, 4096, %s29, [#allocation6], 1024, 1024, 64
    $region9: #{tpu_custom_call.1} parent=1 // pred_fallthru
      _
    // Predicated region
    $region10: #{tpu_custom_call.1} parent=1 // pred_check
      _
    $region11: #{tpu_custom_call.1} parent=1 // pred_check_branch
      %36 = sbr.rel (0) target = $region13
    $region12: #{tpu_custom_call.1} parent=1 // pred_region
      _
    $region13: #{tpu_custom_call.1} parent=1 // pred_fallthru
      _
    // Predicated region
    $region14: #{tpu_custom_call.1} parent=1 // pred_check
      _
    $region15: #{tpu_custom_call.1} parent=1 // pred_check_branch
      %38 = sbr.rel (0) target = $region17
    $region16: #{tpu_custom_call.1} parent=1 // pred_region
      %40 = dma.done [#allocation3], 256
    $region17: #{tpu_custom_call.1} parent=1 // pred_fallthru
      _
    // Predicated region
    $region18: #{tpu_custom_call.1} parent=1 // pred_check
      _
    $region19: #{tpu_custom_call.1} parent=1 // pred_check_branch
      %42 = sbr.rel (0) target = $region21
    $region20: #{tpu_custom_call.1} parent=1 // pred_region
      %44 = dma.done [#allocation6], 4096
    $region21: #{tpu_custom_call.1} parent=1 // pred_fallthru
      _
    %p45 = scmp.eq.s32.totalorder 0, 0
    // Predicated region
    $region22: #{tpu_custom_call.1} parent=1 // pred_check
      %p46 = pneg %p45
    $region23: #{tpu_custom_call.1} parent=1 // pred_check_branch
      %48 = sbr.rel (%p46) target = $region25
    $region24: #{tpu_custom_call.1} parent=1 // pred_region
      %v49 = vld [vmem:[%s2] sm:$0x1]
      %v51 = vperm.slane %v49, 0
      %vm53 = vcmask 254976
      %54 = vst.msk [vmem:[#allocation7] sm:$0x3] %vm53, %v51
    $region25: #{tpu_custom_call.1} parent=1 // pred_fallthru
      _
    %v55 = vld [vmem:[#allocation7] sm:$0x3]
    %s56 = smul.u32 0, 1024
    %s57 = sshra.s32 %s56, 7
    %s58 = sand.u32 %s56, 127
    %s59 = smul.addr %s57, 2
    %s60 = scalar_lea.vmem [#allocation2], %s59
    %v61 = vld [vmem:[%s60] sm:$0xff]
    %v62 = vld [vmem:[%s60 + $0x8] sm:$0xff]
    %v63 = vld [vmem:[#allocation5] sm:$0xff]
    %v64 = vld [vmem:[#allocation5 + $0x8] sm:$0xff]
    %v65 = vld [vmem:[#allocation5 + $0x10] sm:$0xff]
    %v66 = vld [vmem:[#allocation5 + $0x18] sm:$0xff]
    %v67 = vld [vmem:[#allocation5 + $0x20] sm:$0xff]
    %v68 = vld [vmem:[#allocation5 + $0x28] sm:$0xff]
    %v69 = vld [vmem:[#allocation5 + $0x30] sm:$0xff]
    %v70 = vld [vmem:[#allocation5 + $0x38] sm:$0xff]
    %v71 = vld [vmem:[#allocation5 + $0x40] sm:$0xff]
    %v72 = vld [vmem:[#allocation5 + $0x48] sm:$0xff]
    %v73 = vld [vmem:[#allocation5 + $0x50] sm:$0xff]
    %v74 = vld [vmem:[#allocation5 + $0x58] sm:$0xff]
    %v75 = vld [vmem:[#allocation5 + $0x60] sm:$0xff]
    %v76 = vld [vmem:[#allocation5 + $0x68] sm:$0xff]
    %v77 = vld [vmem:[#allocation5 + $0x70] sm:$0xff]
    %v78 = vld [vmem:[#allocation5 + $0x78] sm:$0xff]
    %v79 = vld [vmem:[#allocation5 + $0x80] sm:$0xff]
    %v80 = vld [vmem:[#allocation5 + $0x88] sm:$0xff]
    %v81 = vld [vmem:[#allocation5 + $0x90] sm:$0xff]
    %v82 = vld [vmem:[#allocation5 + $0x98] sm:$0xff]
    %v83 = vld [vmem:[#allocation5 + $0xa0] sm:$0xff]
    %v84 = vld [vmem:[#allocation5 + $0xa8] sm:$0xff]
    %v85 = vld [vmem:[#allocation5 + $0xb0] sm:$0xff]
    %v86 = vld [vmem:[#allocation5 + $0xb8] sm:$0xff]
    %v87 = vld [vmem:[#allocation5 + $0xc0] sm:$0xff]
    %v88 = vld [vmem:[#allocation5 + $0xc8] sm:$0xff]
    %v89 = vld [vmem:[#allocation5 + $0xd0] sm:$0xff]
    %v90 = vld [vmem:[#allocation5 + $0xd8] sm:$0xff]
    %v91 = vld [vmem:[#allocation5 + $0xe0] sm:$0xff]
    %v92 = vld [vmem:[#allocation5 + $0xe8] sm:$0xff]
    %v93 = vld [vmem:[#allocation5 + $0xf0] sm:$0xff]
    %v94 = vld [vmem:[#allocation5 + $0xf8] sm:$0xff]
    %97 = vst [vmem:[#allocation1] ss:$4 sm:$0xff] %v61
    %s98 = scalar_lea.vmem [#allocation1], 32
    %99 = vst [vmem:[%s98] ss:$4 sm:$0xff] %v62
    %v100 = vld.sshfl [vmem:[#allocation1] sm:$0xff pattern:$0x73625140]
    %v101 = vld.sshfl [vmem:[#allocation1 + $0x8] sm:$0xff pattern:$0x73625140]
    %v102 = vld.sshfl [vmem:[#allocation1 + $0x10] sm:$0xff pattern:$0x73625140]
    %v103 = vld.sshfl [vmem:[#allocation1 + $0x18] sm:$0xff pattern:$0x73625140]
    %v104 = vld.sshfl [vmem:[#allocation1 + $0x20] sm:$0xff pattern:$0x73625140]
    %v105 = vld.sshfl [vmem:[#allocation1 + $0x28] sm:$0xff pattern:$0x73625140]
    %v106 = vld.sshfl [vmem:[#allocation1 + $0x30] sm:$0xff pattern:$0x73625140]
    %v107 = vld.sshfl [vmem:[#allocation1 + $0x38] sm:$0xff pattern:$0x73625140]
    %116 = vmatpush.xpose.msra.mxu0 0.0
    %117 = vmatpush.xpose.msra.mxu0 0.0
    %118 = vmatpush.xpose.msra.mxu0 0.0
    %119 = vmatpush.xpose.msra.mxu0 0.0
    %120 = vmatpush.xpose.msra.mxu0 0.0
    %121 = vmatpush.xpose.msra.mxu0 0.0
    %122 = vmatpush.xpose.msra.mxu0 0.0
    %123 = vmatpush.xpose.msra.mxu0 0.0
    %124 = vmatpush.xpose.msra.mxu0 0.0
    %125 = vmatpush.xpose.msra.mxu0 0.0
    %126 = vmatpush.xpose.msra.mxu0 0.0
    %127 = vmatpush.xpose.msra.mxu0 0.0
    %128 = vmatpush.xpose.msra.mxu0 %v87
    %129 = vmatpush.xpose.msra.mxu0 %v79
    %130 = vmatpush.xpose.msra.mxu0 %v71
    %131 = vmatpush.xpose.msra.mxu0 %v63
    %132 = vmatmul.f32.gmra.mxu0 %v100
    %v133 = vpop.f32.mrf.mxu0
    %v134 = vadd.f32 0.0, %v133
    %135 = vdwg.mxu0
    %136 = vmatpush.xpose.msra.mxu0 0.0
    %137 = vmatpush.xpose.msra.mxu0 0.0
    %138 = vmatpush.xpose.msra.mxu0 0.0
    %139 = vmatpush.xpose.msra.mxu0 0.0
    %140 = vmatpush.xpose.msra.mxu0 0.0
    %141 = vmatpush.xpose.msra.mxu0 0.0
    %142 = vmatpush.xpose.msra.mxu0 0.0
    %143 = vmatpush.xpose.msra.mxu0 0.0
    %144 = vmatpush.xpose.msra.mxu0 0.0
    %145 = vmatpush.xpose.msra.mxu0 0.0
    %146 = vmatpush.xpose.msra.mxu0 0.0
    %147 = vmatpush.xpose.msra.mxu0 0.0
    %148 = vmatpush.xpose.msra.mxu0 %v88
    %149 = vmatpush.xpose.msra.mxu0 %v80
    %150 = vmatpush.xpose.msra.mxu0 %v72
    %151 = vmatpush.xpose.msra.mxu0 %v64
    %152 = vmatmul.f32.gmra.mxu0 %v101
    %v153 = vpop.f32.mrf.mxu0
    %v154 = vadd.f32 %v134, %v153
    %155 = vdwg.mxu0
    %156 = vmatpush.xpose.msra.mxu0 0.0
    %157 = vmatpush.xpose.msra.mxu0 0.0
    %158 = vmatpush.xpose.msra.mxu0 0.0
    %159 = vmatpush.xpose.msra.mxu0 0.0
    %160 = vmatpush.xpose.msra.mxu0 0.0
    %161 = vmatpush.xpose.msra.mxu0 0.0
    %162 = vmatpush.xpose.msra.mxu0 0.0
    %163 = vmatpush.xpose.msra.mxu0 0.0
    %164 = vmatpush.xpose.msra.mxu0 0.0
    %165 = vmatpush.xpose.msra.mxu0 0.0
    %166 = vmatpush.xpose.msra.mxu0 0.0
    %167 = vmatpush.xpose.msra.mxu0 0.0
    %168 = vmatpush.xpose.msra.mxu0 %v89
    %169 = vmatpush.xpose.msra.mxu0 %v81
    %170 = vmatpush.xpose.msra.mxu0 %v73
    %171 = vmatpush.xpose.msra.mxu0 %v65
    %172 = vmatmul.f32.gmra.mxu0 %v102
    %v173 = vpop.f32.mrf.mxu0
    %v174 = vadd.f32 %v154, %v173
    %175 = vdwg.mxu0
    %176 = vmatpush.xpose.msra.mxu0 0.0
    %177 = vmatpush.xpose.msra.mxu0 0.0
    %178 = vmatpush.xpose.msra.mxu0 0.0
    %179 = vmatpush.xpose.msra.mxu0 0.0
    %180 = vmatpush.xpose.msra.mxu0 0.0
    %181 = vmatpush.xpose.msra.mxu0 0.0
    %182 = vmatpush.xpose.msra.mxu0 0.0
    %183 = vmatpush.xpose.msra.mxu0 0.0
    %184 = vmatpush.xpose.msra.mxu0 0.0
    %185 = vmatpush.xpose.msra.mxu0 0.0
    %186 = vmatpush.xpose.msra.mxu0 0.0
    %187 = vmatpush.xpose.msra.mxu0 0.0
    %188 = vmatpush.xpose.msra.mxu0 %v90
    %189 = vmatpush.xpose.msra.mxu0 %v82
    %190 = vmatpush.xpose.msra.mxu0 %v74
    %191 = vmatpush.xpose.msra.mxu0 %v66
    %192 = vmatmul.f32.gmra.mxu0 %v103
    %v193 = vpop.f32.mrf.mxu0
    %v194 = vadd.f32 %v174, %v193
    %195 = vdwg.mxu0
    %196 = vmatpush.xpose.msra.mxu0 0.0
    %197 = vmatpush.xpose.msra.mxu0 0.0
    %198 = vmatpush.xpose.msra.mxu0 0.0
    %199 = vmatpush.xpose.msra.mxu0 0.0
    %200 = vmatpush.xpose.msra.mxu0 0.0
    %201 = vmatpush.xpose.msra.mxu0 0.0
    %202 = vmatpush.xpose.msra.mxu0 0.0
    %203 = vmatpush.xpose.msra.mxu0 0.0
    %204 = vmatpush.xpose.msra.mxu0 0.0
    %205 = vmatpush.xpose.msra.mxu0 0.0
    %206 = vmatpush.xpose.msra.mxu0 0.0
    %207 = vmatpush.xpose.msra.mxu0 0.0
    %208 = vmatpush.xpose.msra.mxu0 %v91
    %209 = vmatpush.xpose.msra.mxu0 %v83
    %210 = vmatpush.xpose.msra.mxu0 %v75
    %211 = vmatpush.xpose.msra.mxu0 %v67
    %212 = vmatmul.f32.gmra.mxu0 %v104
    %v213 = vpop.f32.mrf.mxu0
    %v214 = vadd.f32 %v194, %v213
    %215 = vdwg.mxu0
    %216 = vmatpush.xpose.msra.mxu0 0.0
    %217 = vmatpush.xpose.msra.mxu0 0.0
    %218 = vmatpush.xpose.msra.mxu0 0.0
    %219 = vmatpush.xpose.msra.mxu0 0.0
    %220 = vmatpush.xpose.msra.mxu0 0.0
    %221 = vmatpush.xpose.msra.mxu0 0.0
    %222 = vmatpush.xpose.msra.mxu0 0.0
    %223 = vmatpush.xpose.msra.mxu0 0.0
    %224 = vmatpush.xpose.msra.mxu0 0.0
    %225 = vmatpush.xpose.msra.mxu0 0.0
    %226 = vmatpush.xpose.msra.mxu0 0.0
    %227 = vmatpush.xpose.msra.mxu0 0.0
    %228 = vmatpush.xpose.msra.mxu0 %v92
    %229 = vmatpush.xpose.msra.mxu0 %v84
    %230 = vmatpush.xpose.msra.mxu0 %v76
    %231 = vmatpush.xpose.msra.mxu0 %v68
    %232 = vmatmul.f32.gmra.mxu0 %v105
    %v233 = vpop.f32.mrf.mxu0
    %v234 = vadd.f32 %v214, %v233
    %235 = vdwg.mxu0
    %236 = vmatpush.xpose.msra.mxu0 0.0
    %237 = vmatpush.xpose.msra.mxu0 0.0
    %238 = vmatpush.xpose.msra.mxu0 0.0
    %239 = vmatpush.xpose.msra.mxu0 0.0
    %240 = vmatpush.xpose.msra.mxu0 0.0
    %241 = vmatpush.xpose.msra.mxu0 0.0
    %242 = vmatpush.xpose.msra.mxu0 0.0
    %243 = vmatpush.xpose.msra.mxu0 0.0
    %244 = vmatpush.xpose.msra.mxu0 0.0
    %245 = vmatpush.xpose.msra.mxu0 0.0
    %246 = vmatpush.xpose.msra.mxu0 0.0
    %247 = vmatpush.xpose.msra.mxu0 0.0
    %248 = vmatpush.xpose.msra.mxu0 %v93
    %249 = vmatpush.xpose.msra.mxu0 %v85
    %250 = vmatpush.xpose.msra.mxu0 %v77
    %251 = vmatpush.xpose.msra.mxu0 %v69
    %252 = vmatmul.f32.gmra.mxu0 %v106
    %v253 = vpop.f32.mrf.mxu0
    %v254 = vadd.f32 %v234, %v253
    %255 = vdwg.mxu0
    %256 = vmatpush.xpose.msra.mxu0 0.0
    %257 = vmatpush.xpose.msra.mxu0 0.0
    %258 = vmatpush.xpose.msra.mxu0 0.0
    %259 = vmatpush.xpose.msra.mxu0 0.0
    %260 = vmatpush.xpose.msra.mxu0 0.0
    %261 = vmatpush.xpose.msra.mxu0 0.0
    %262 = vmatpush.xpose.msra.mxu0 0.0
    %263 = vmatpush.xpose.msra.mxu0 0.0
    %264 = vmatpush.xpose.msra.mxu0 0.0
    %265 = vmatpush.xpose.msra.mxu0 0.0
    %266 = vmatpush.xpose.msra.mxu0 0.0
    %267 = vmatpush.xpose.msra.mxu0 0.0
    %268 = vmatpush.xpose.msra.mxu0 %v94
    %269 = vmatpush.xpose.msra.mxu0 %v86
    %270 = vmatpush.xpose.msra.mxu0 %v78
    %271 = vmatpush.xpose.msra.mxu0 %v70
    %272 = vmatmul.f32.gmra.mxu0 %v107
    %v273 = vpop.f32.mrf.mxu0
    %v274 = vadd.f32 %v254, %v273
    %275 = vdwg.mxu0
    %v276 = vadd.f32 %v55, %v274
    %vm277 = vcmask 254976
    %278 = vst.msk [vmem:[#allocation7] sm:$0x3] %vm277, %v276
    // Predicated region
    $region26: #{tpu_custom_call.1} parent=1 // pred_check
      _
    $region27: #{tpu_custom_call.1} parent=1 // pred_check_branch
      %280 = sbr.rel (0) target = $region29
    $region28: #{tpu_custom_call.1} parent=1 // pred_region
      %282 = vsyncadd [#allocation4], 0
      %s284 = sshll.u32 [#allocation7], 4
      %s285 = int_to_ptr.vmem [resolvable:$true] %s284
      %s286 = sshll.u32 %s3, 4
      %s287 = int_to_ptr.hbm [resolvable:$true] %s286
      %289 = dma.vmem_to_hbm [thread:$0]  %s285, 32, %s287, [#allocation4]
    $region29: #{tpu_custom_call.1} parent=1 // pred_fallthru
      _
    // Predicated region
    $region30: #{tpu_custom_call.1} parent=1 // pred_check
      _
    $region31: #{tpu_custom_call.1} parent=1 // pred_check_branch
      %291 = sbr.rel (0) target = $region33
    $region32: #{tpu_custom_call.1} parent=1 // pred_region
      %293 = dma.done [#allocation4], 32
    $region33: #{tpu_custom_call.1} parent=1 // pred_fallthru
      _
    %294 = vsyncpa [#allocation3], 1
    %295 = vsyncpa [#allocation6], 1
    %296 = vsyncpa [#allocation4], 1

</llo_original>
